<compile_context>
chip_gen: v5e
topology: v5e:2x2
jax: 0.10.0
libtpu: 0.0.40
codegen_flags: <defaults>
</compile_context>

<pallas_src>
import functools

import jax
import jax.numpy as jnp
from jax.experimental import pallas as pl
from jax.experimental.pallas import tpu as pltpu


# ----------------------------------------------------------------------------
# Kernels
# ----------------------------------------------------------------------------
def _proj_bias_kernel(x_ref, w_ref, b_ref, o_ref):
    # Fast (non-overlapping windows) path.
    # x_ref: (rows, S*C)  -- each row = one pooling window's S frames, frame-
    #                        major along lanes.
    # w_ref: (S*C, H)     -- pooling (mean of first K frames, 1/K scale) folded
    #                        into the 1x1-conv weight; rows >= K*C are zero.
    # b_ref: (1, H)       -- Conv1d bias.
    # o_ref: (rows, H)
    h = jnp.dot(x_ref[...], w_ref[...], preferred_element_type=jnp.float32)
    o_ref[...] = (h + b_ref[...].astype(jnp.float32)).astype(o_ref.dtype)


def _overlap_pool_proj_kernel(x_ref, w_ref, b_ref, o_ref, *, kernel_size,
                              stride):
    # General path (kernel_size > stride), one batch element per grid step.
    # x_ref: (T, C); w_ref: (C, H); b_ref: (1, H); o_ref: (T_out, H).
    # Pooling = K strided sublane loads + VPU adds (f32 accumulation), then a
    # single (T_out, C) @ (C, H) MXU matmul.
    t_out = o_ref.shape[0]
    acc = x_ref[pl.ds(0, t_out, stride=stride), :].astype(jnp.float32)
    for k in range(1, kernel_size):
        acc = acc + x_ref[pl.ds(k, t_out, stride=stride), :].astype(jnp.float32)
    pooled = (acc * (1.0 / kernel_size)).astype(w_ref.dtype)
    h = jnp.dot(pooled, w_ref[...], preferred_element_type=jnp.float32)
    o_ref[...] = (h + b_ref[...].astype(jnp.float32)).astype(o_ref.dtype)


# ----------------------------------------------------------------------------
# Row-tiling helper
# ----------------------------------------------------------------------------
def _choose_row_tiling(n_out, max_rows):
    """Pick (rows_per_tile, n_tiles, needs_pad) for the flattened row grid.

    Prefers (a) no padding (tile divides n_out), (b) an even tile count so
    both v7x TensorCores get equal work, (c) the largest tile to amortize the
    ~0.35 us per-step overhead.  rows_per_tile is a multiple of 8 whenever
    n_tiles > 1 (the (8, 128) block constraint).
    """
    if n_out <= max_rows:
        return n_out, 1, False          # single full-extent block, no pad
    best = None
    best_even = None
    for d in range(8, max_rows + 1, 8):
        if n_out % d == 0:
            nt = n_out // d
            best = (d, nt)
            if nt % 2 == 0:
                best_even = (d, nt)
    if best_even is not None:
        return best_even[0], best_even[1], False
    if best is not None:
        return best[0], best[1], False
    # Fallback: no multiple-of-8 divisor <= max_rows; pad the row dimension.
    rows = max_rows
    return rows, -(-n_out // rows), True


# ----------------------------------------------------------------------------
# Wrapper
# ----------------------------------------------------------------------------
def frame_avg_pool(visual_input, weight, bias, *, kernel_size, stride,
                   max_block_rows=2048):
    """FrameAvgPool forward.

    visual_input: (B, T, C_in) channel-last (the PyTorch forward transposes to
                  NCW internally; here the 1x1 conv is a matmul over channels).
    weight:       (H, C_in)  Conv1d weight with the trailing k=1 dim dropped.
    bias:         (H,)
    Returns (B, T_out, H), T_out = (T - kernel_size) // stride + 1.
    """
    B, T, C = visual_input.shape
    H = weight.shape[0]
    K, S = kernel_size, stride
    T_out = (T - K) // S + 1
    assert T_out >= 1, "sequence shorter than pooling window"

    out_dtype = visual_input.dtype
    w_t = jnp.transpose(weight)              # (C, H), no wrapper upcast
    b2d = bias.reshape(1, H)

    if K <= S:
        # ----------------- fast path: non-overlapping windows ---------------
        # Fold the window-mean and 1/K scale into the projection weight.
        w_f32 = w_t.astype(jnp.float32) * (1.0 / K)
        blocks = [w_f32] * K
        if S > K:
            blocks.append(jnp.zeros(((S - K) * C, H), jnp.float32))
        w_stacked = jnp.concatenate(blocks, axis=0).astype(weight.dtype)  # (S*C, H)

        # Lay out every window's S frames as one row of width S*C.
        T_pad = T_out * S
        x = visual_input
        if T_pad < T:
            # Rare (T not a multiple of S): trailing frames are never read.
            x = x[:, :T_pad, :]
        elif T_pad > T:
            # Rare (K < S): missing tail frames land on zero rows of w_stacked,
            # so the pad value is irrelevant.
            x = jnp.pad(x, ((0, 0), (0, T_pad - T), (0, 0)))
        x_rows = x.reshape(B * T_out, S * C)   # free reshape when no pad/slice

        N_out = B * T_out

        # VMEM-aware row-tile cap (double-buffered x/out tiles + const weight),
        # conservative for v5e's 16 MiB scoped default; v6e/v7x have >= 32 MiB.
        x_bytes = jnp.dtype(visual_input.dtype).itemsize
        w_bytes = jnp.dtype(weight.dtype).itemsize
        o_bytes = jnp.dtype(out_dtype).itemsize
        vmem_budget = 12 * 1024 * 1024
        weight_footprint = (S * C * H + H) * w_bytes * 2
        per_row = (S * C * x_bytes + H * o_bytes) * 2
        cap = max((vmem_budget - weight_footprint) // per_row, 8)
        max_rows = max((min(max_block_rows, cap) // 8) * 8, 8)

        rows_per_tile, n_tiles, needs_pad = _choose_row_tiling(N_out, max_rows)
        N_pad = rows_per_tile * n_tiles
        if needs_pad and N_pad > N_out:
            x_rows = jnp.pad(x_rows, ((0, N_pad - N_out), (0, 0)))

        out = pl.pallas_call(
            _proj_bias_kernel,
            out_shape=jax.ShapeDtypeStruct((N_pad, H), out_dtype),
            grid_spec=pltpu.PrefetchScalarGridSpec(
                num_scalar_prefetch=0,
                grid=(n_tiles,),
                in_specs=[
                    pl.BlockSpec((rows_per_tile, S * C), lambda i: (i, 0)),
                    pl.BlockSpec((S * C, H), lambda i: (0, 0)),   # folded weight
                    pl.BlockSpec((1, H), lambda i: (0, 0)),       # bias
                ],
                out_specs=pl.BlockSpec((rows_per_tile, H), lambda i: (i, 0)),
            ),
            compiler_params=pltpu.CompilerParams(
                dimension_semantics=("parallel",)),
        )(x_rows, w_stacked, b2d)
        if N_pad > N_out:
            out = out[:N_out]
        return out.reshape(B, T_out, H)

    # ------------- general path: overlapping windows (K > S) ----------------
    kern = functools.partial(_overlap_pool_proj_kernel,
                             kernel_size=K, stride=S)
    out = pl.pallas_call(
        kern,
        out_shape=jax.ShapeDtypeStruct((B, T_out, H), out_dtype),
        grid_spec=pltpu.PrefetchScalarGridSpec(
            num_scalar_prefetch=0,
            grid=(B,),
            in_specs=[
                pl.BlockSpec((None, T, C), lambda b: (b, 0, 0)),
                pl.BlockSpec((C, H), lambda b: (0, 0)),
                pl.BlockSpec((1, H), lambda b: (0, 0)),
            ],
            out_specs=pl.BlockSpec((None, T_out, H), lambda b: (b, 0, 0)),
        ),
        compiler_params=pltpu.CompilerParams(
            dimension_semantics=("parallel",)),
    )(visual_input, w_t, b2d)
    return out


# ----------------------------------------------------------------------------
# Pure-JAX reference (mirrors the PyTorch forward, f32)
# ----------------------------------------------------------------------------
def _reference(visual_input, weight, bias, *, kernel_size, stride):
    x = visual_input.astype(jnp.float32)
    w = weight.astype(jnp.float32)
    b = bias.astype(jnp.float32)
    h = jnp.einsum("btc,hc->bth", x, w) + b[None, None, :]
    T = h.shape[1]
    T_out = (T - kernel_size) // stride + 1
    acc = h[:, 0:(T_out - 1) * stride + 1:stride, :]
    for k in range(1, kernel_size):
        acc = acc + h[:, k:k + (T_out - 1) * stride + 1:stride, :]
    return acc / kernel_size


if __name__ == "__main__":
    # config: input_size=128, hidden_size=128 (lane-dense), kernel_size=2, stride=2
    B, T, C_IN, HID = 2, 16, 128, 128
    KSIZE, STRIDE = 2, 2

    key = jax.random.PRNGKey(0)
    k_x, k_w, k_b = jax.random.split(key, 3)

    visual_input = jax.random.normal(k_x, (B, T, C_IN), dtype=jnp.float32)
    bound = 1.0 / (C_IN ** 0.5)    # Conv1d-style init
    weight = jax.random.uniform(k_w, (HID, C_IN), minval=-bound, maxval=bound,
                                dtype=jnp.float32)
    bias = jax.random.uniform(k_b, (HID,), minval=-bound, maxval=bound,
                              dtype=jnp.float32)

    T_OUT = (T - KSIZE) // STRIDE + 1

    # f32 path (matches the PyTorch module's dtype).
    out = jax.block_until_ready(
        frame_avg_pool(visual_input, weight, bias,
                       kernel_size=KSIZE, stride=STRIDE))
    ref = _reference(visual_input, weight, bias,
                     kernel_size=KSIZE, stride=STRIDE)
    assert out.shape == (B, T_OUT, HID), out.shape
    assert jnp.allclose(out, ref, atol=1e-4, rtol=1e-4), "f32 mismatch"

    # bf16 inputs: MXU-native dtype, f32 accumulation inside the kernel.
    out_bf16 = jax.block_until_ready(
        frame_avg_pool(visual_input.astype(jnp.bfloat16),
                       weight.astype(jnp.bfloat16),
                       bias.astype(jnp.bfloat16),
                       kernel_size=KSIZE, stride=STRIDE))
    assert out_bf16.dtype == jnp.bfloat16
    assert jnp.allclose(out_bf16.astype(jnp.float32), ref,
                        atol=5e-2, rtol=5e-2), "bf16 mismatch"

    # Overlapping-window config exercises the strided-load general path.
    out_ov = jax.block_until_ready(
        frame_avg_pool(visual_input, weight, bias, kernel_size=4, stride=2))
    ref_ov = _reference(visual_input, weight, bias, kernel_size=4, stride=2)
    assert out_ov.shape == ref_ov.shape, (out_ov.shape, ref_ov.shape)
    assert jnp.allclose(out_ov, ref_ov, atol=1e-4, rtol=1e-4), "overlap mismatch"

    # Small-but-tiled run exercises the multi-grid-step row-tiled fast path
    # (pad-free divisor tiling, even tile count).
    B2, T2 = 2, 128
    x2 = jax.random.normal(k_x, (B2, T2, C_IN), dtype=jnp.float32)
    out2 = jax.block_until_ready(
        frame_avg_pool(x2, weight, bias, kernel_size=2, stride=2,
                       max_block_rows=64))
    ref2 = _reference(x2, weight, bias, kernel_size=2, stride=2)
    assert out2.shape == ref2.shape, (out2.shape, ref2.shape)
    assert jnp.allclose(out2, ref2, atol=1e-4, rtol=1e-4), "tiled mismatch"

    print("KERNEL_OK")
</pallas_src>

<mosaic_0001>
module attributes {stable_mosaic.version = 11 : i64} {
  func.func @_proj_bias_kernel(%arg0: i32, %arg1: memref<16x256xf32, #tpu.memory_space<vmem>>, %arg2: memref<256x128xf32, #tpu.memory_space<vmem>>, %arg3: memref<1x128xf32, #tpu.memory_space<vmem>>, %arg4: memref<16x128xf32, #tpu.memory_space<vmem>>) attributes {dimension_semantics = [#tpu.dimension_semantics<parallel>], iteration_bounds = array<i64: 1>, scalar_prefetch = 0 : i64, scratch_operands = 0 : i64, tpu.core_type = #tpu.core_type<tc>, window_params = [{transform_indices = @transform_0, window_bounds = array<i64: 16, 256>}, {pipeline_mode = #tpu.pipeline_mode<synchronous>, transform_indices = @transform_1, window_bounds = array<i64: 256, 128>}, {pipeline_mode = #tpu.pipeline_mode<synchronous>, transform_indices = @transform_2, window_bounds = array<i64: 1, 128>}, {transform_indices = @transform_3, window_bounds = array<i64: 16, 128>}]} {
    %c0 = arith.constant 0 : index
    %c0_0 = arith.constant 0 : index
    %0 = vector.load %arg1[%c0, %c0_0] : memref<16x256xf32, #tpu.memory_space<vmem>>, vector<16x256xf32>
    %c0_1 = arith.constant 0 : index
    %c0_2 = arith.constant 0 : index
    %1 = vector.load %arg2[%c0_1, %c0_2] : memref<256x128xf32, #tpu.memory_space<vmem>>, vector<256x128xf32>
    %cst = arith.constant dense<0.000000e+00> : vector<16x128xf32>
    %2 = tpu.matmul %0, %1, %cst {dimension_numbers = #tpu.dot_dimension_numbers<[1], [0], [0], [1], [0, 0, 1, 1], [], []>} : vector<16x256xf32>, vector<256x128xf32>, vector<16x128xf32> -> vector<16x128xf32>
    %c0_3 = arith.constant 0 : index
    %c0_4 = arith.constant 0 : index
    %3 = vector.load %arg3[%c0_3, %c0_4] : memref<1x128xf32, #tpu.memory_space<vmem>>, vector<1x128xf32>
    %4 = vector.broadcast %3 : vector<1x128xf32> to vector<16x128xf32>
    %5 = arith.addf %2, %4 : vector<16x128xf32>
    %c0_5 = arith.constant 0 : index
    %c0_6 = arith.constant 0 : index
    %6 = vector.load %arg4[%c0_5, %c0_6] : memref<16x128xf32, #tpu.memory_space<vmem>>, vector<16x128xf32>
    tpu.vector_store %arg4[%c0_5, %c0_6], %5 {strides = array<i32>} : memref<16x128xf32, #tpu.memory_space<vmem>>, vector<16x128xf32>,
    return
  }
  func.func @transform_0(%arg0: i32) -> (i32, i32) {
    %c0_i32 = arith.constant 0 : i32
    %c0_i32_0 = arith.constant 0 : i32
    return %arg0, %c0_i32 : i32, i32
  }
  func.func @transform_1(%arg0: i32) -> (i32, i32) {
    %c0_i32 = arith.constant 0 : i32
    %c0_i32_0 = arith.constant 0 : i32
    %c0_i32_1 = arith.constant 0 : i32
    return %c0_i32, %c0_i32_0 : i32, i32
  }
  func.func @transform_2(%arg0: i32) -> (i32, i32) {
    %c0_i32 = arith.constant 0 : i32
    %c0_i32_0 = arith.constant 0 : i32
    %c0_i32_1 = arith.constant 0 : i32
    return %c0_i32, %c0_i32_0 : i32, i32
  }
  func.func @transform_3(%arg0: i32) -> (i32, i32) {
    %c0_i32 = arith.constant 0 : i32
    %c0_i32_0 = arith.constant 0 : i32
    return %arg0, %c0_i32 : i32, i32
  }
}

</mosaic_0001>

<llo_original>
// kernel: tpu_custom_call.1
$region0: #{tpu_custom_call.1}
  #allocation0 [shape = 'u32[]', space=smem, size = 0x4, offset = 0x4, fixed_abs, tag = 'smem constant byte address 0x4 - core index']
  #allocation1 [shape = 'u32[72,128]{1,0:T(1,128)}', space=vmem, size = 0x9000, scoped, tag = 'internal scratch']
  %s0 = inlined_call_operand.hbm [shape: f32[16,256], index: 0, kind: input, shape index: {}]
  %s1 = inlined_call_operand.hbm [shape: f32[256,128], index: 1, kind: input, shape index: {}]
  %s2 = inlined_call_operand.vmem [shape: f32[1,128], index: 2, kind: input, shape index: {}]
  %s3 = inlined_call_operand.hbm [shape: f32[16,128], index: 3, kind: output, shape index: {}]
  %s4 = sld [smem:[#allocation0]]
  $region30: #{tpu_custom_call.1} parent=0
    _
  %s6 = ssub.s32 1, %s4
  %s7 = scalar_select 0, %s6, %s4
  $region1: #{tpu_custom_call.1} parent=0
    #allocation2 [shape = 'u8[16384]{0}', space=vmem, size = 0x4000, scoped, tag = 'input window, operand 0, single buffered']
    #allocation3 [shape = 's32[1]{0}', space=sflag, size = 0x4, scoped, tag = 'scoped memory for tpu_custom_call.1']
    #allocation4 [shape = 's32[1]{0}', space=sflag, size = 0x4, scoped, tag = 'scoped memory for tpu_custom_call.1']
    #allocation5 [shape = 'u8[131072]{0}', space=vmem, size = 0x20000, scoped, tag = 'input window, operand 1, single buffered']
    #allocation6 [shape = 's32[1]{0}', space=sflag, size = 0x4, scoped, tag = 'scoped memory for tpu_custom_call.1']
    #allocation7 [shape = 'u8[8192]{0}', space=vmem, size = 0x2000, scoped, tag = 'output window, operand 0, single buffered']
    %8 = vsyncpa [#allocation3], 0
    %9 = vsyncpa [#allocation6], 0
    %10 = vsyncpa [#allocation4], 0
    // Predicated region
    $region2: #{tpu_custom_call.1} parent=1 // pred_check
      _
    $region3: #{tpu_custom_call.1} parent=1 // pred_check_branch
      %12 = sbr.rel (0) target = $region5
    $region4: #{tpu_custom_call.1} parent=1 // pred_region
      %14 = vsyncadd [#allocation3], 0
      %s15 = sshll.u32 %s0, 4
      %s16 = int_to_ptr.hbm [resolvable:$true] %s15
      %s17 = sshll.u32 [#allocation2], 4
      %s18 = int_to_ptr.vmem [resolvable:$true] %s17
      %23 = dma.hbm_to_vmem [thread:$0]  %s16, 512, %s18, [#allocation3], 256, 256, 16
    $region5: #{tpu_custom_call.1} parent=1 // pred_fallthru
      _
    // Predicated region
    $region6: #{tpu_custom_call.1} parent=1 // pred_check
      _
    $region7: #{tpu_custom_call.1} parent=1 // pred_check_branch
      %25 = sbr.rel (0) target = $region9
    $region8: #{tpu_custom_call.1} parent=1 // pred_region
      %27 = vsyncadd [#allocation6], 0
      %s28 = sshll.u32 %s1, 4
      %s29 = int_to_ptr.hbm [resolvable:$true] %s28
      %s30 = sshll.u32 [#allocation5], 4
      %s31 = int_to_ptr.vmem [resolvable:$true] %s30
      %36 = dma.hbm_to_vmem [thread:$0]  %s29, 4096, %s31, [#allocation6], 128, 128, 8
    $region9: #{tpu_custom_call.1} parent=1 // pred_fallthru
      _
    // Predicated region
    $region10: #{tpu_custom_call.1} parent=1 // pred_check
      _
    $region11: #{tpu_custom_call.1} parent=1 // pred_check_branch
      %38 = sbr.rel (0) target = $region13
    $region12: #{tpu_custom_call.1} parent=1 // pred_region
      _
    $region13: #{tpu_custom_call.1} parent=1 // pred_fallthru
      _
    // Predicated region
    $region14: #{tpu_custom_call.1} parent=1 // pred_check
      _
    $region15: #{tpu_custom_call.1} parent=1 // pred_check_branch
      %40 = sbr.rel (0) target = $region17
    $region16: #{tpu_custom_call.1} parent=1 // pred_region
      %42 = dma.done [#allocation3], 512
    $region17: #{tpu_custom_call.1} parent=1 // pred_fallthru
      _
    // Predicated region
    $region18: #{tpu_custom_call.1} parent=1 // pred_check
      _
    $region19: #{tpu_custom_call.1} parent=1 // pred_check_branch
      %44 = sbr.rel (0) target = $region21
    $region20: #{tpu_custom_call.1} parent=1 // pred_region
      %46 = dma.done [#allocation6], 4096
    $region21: #{tpu_custom_call.1} parent=1 // pred_fallthru
      _
    %v47 = vld [vmem:[#allocation2] sm:$0xff]
    %v48 = vld [vmem:[#allocation2 + $0x8] sm:$0xff]
    %v49 = vld [vmem:[#allocation2 + $0x10] sm:$0xff]
    %v50 = vld [vmem:[#allocation2 + $0x18] sm:$0xff]
    %v51 = vld [vmem:[#allocation5] sm:$0xff]
    %v52 = vld [vmem:[#allocation5 + $0x8] sm:$0xff]
    %v53 = vld [vmem:[#allocation5 + $0x10] sm:$0xff]
    %v54 = vld [vmem:[#allocation5 + $0x18] sm:$0xff]
    %v55 = vld [vmem:[#allocation5 + $0x20] sm:$0xff]
    %v56 = vld [vmem:[#allocation5 + $0x28] sm:$0xff]
    %v57 = vld [vmem:[#allocation5 + $0x30] sm:$0xff]
    %v58 = vld [vmem:[#allocation5 + $0x38] sm:$0xff]
    %v59 = vld [vmem:[#allocation5 + $0x40] sm:$0xff]
    %v60 = vld [vmem:[#allocation5 + $0x48] sm:$0xff]
    %v61 = vld [vmem:[#allocation5 + $0x50] sm:$0xff]
    %v62 = vld [vmem:[#allocation5 + $0x58] sm:$0xff]
    %v63 = vld [vmem:[#allocation5 + $0x60] sm:$0xff]
    %v64 = vld [vmem:[#allocation5 + $0x68] sm:$0xff]
    %v65 = vld [vmem:[#allocation5 + $0x70] sm:$0xff]
    %v66 = vld [vmem:[#allocation5 + $0x78] sm:$0xff]
    %v67 = vld [vmem:[#allocation5 + $0x80] sm:$0xff]
    %v68 = vld [vmem:[#allocation5 + $0x88] sm:$0xff]
    %v69 = vld [vmem:[#allocation5 + $0x90] sm:$0xff]
    %v70 = vld [vmem:[#allocation5 + $0x98] sm:$0xff]
    %v71 = vld [vmem:[#allocation5 + $0xa0] sm:$0xff]
    %v72 = vld [vmem:[#allocation5 + $0xa8] sm:$0xff]
    %v73 = vld [vmem:[#allocation5 + $0xb0] sm:$0xff]
    %v74 = vld [vmem:[#allocation5 + $0xb8] sm:$0xff]
    %v75 = vld [vmem:[#allocation5 + $0xc0] sm:$0xff]
    %v76 = vld [vmem:[#allocation5 + $0xc8] sm:$0xff]
    %v77 = vld [vmem:[#allocation5 + $0xd0] sm:$0xff]
    %v78 = vld [vmem:[#allocation5 + $0xd8] sm:$0xff]
    %v79 = vld [vmem:[#allocation5 + $0xe0] sm:$0xff]
    %v80 = vld [vmem:[#allocation5 + $0xe8] sm:$0xff]
    %v81 = vld [vmem:[#allocation5 + $0xf0] sm:$0xff]
    %v82 = vld [vmem:[#allocation5 + $0xf8] sm:$0xff]
    %v83 = vld [vmem:[%s2] sm:$0x1]
    %v85 = vperm.slane %v83, 0
    %87 = vmatpush.msra.mxu0 %v66
    %88 = vmatpush.msra.mxu0 %v65
    %89 = vmatpush.msra.mxu0 %v64
    %90 = vmatpush.msra.mxu0 %v63
    %91 = vmatpush.msra.mxu0 %v62
    %92 = vmatpush.msra.mxu0 %v61
    %93 = vmatpush.msra.mxu0 %v60
    %94 = vmatpush.msra.mxu0 %v59
    %95 = vmatpush.msra.mxu0 %v58
    %96 = vmatpush.msra.mxu0 %v57
    %97 = vmatpush.msra.mxu0 %v56
    %98 = vmatpush.msra.mxu0 %v55
    %99 = vmatpush.msra.mxu0 %v54
    %100 = vmatpush.msra.mxu0 %v53
    %101 = vmatpush.msra.mxu0 %v52
    %102 = vmatpush.msra.mxu0 %v51
    %103 = vmatmul.f32.gmra.mxu0 %v47
    %v104 = vpop.f32.mrf.mxu0
    %v105 = vadd.f32 %v85, %v104
    %106 = vmatmul.f32.gmra.mxu0 %v49
    %v107 = vpop.f32.mrf.mxu0
    %v108 = vadd.f32 %v85, %v107
    %109 = vdwg.mxu0
    %110 = vmatpush.msra.mxu0 %v82
    %111 = vmatpush.msra.mxu0 %v81
    %112 = vmatpush.msra.mxu0 %v80
    %113 = vmatpush.msra.mxu0 %v79
    %114 = vmatpush.msra.mxu0 %v78
    %115 = vmatpush.msra.mxu0 %v77
    %116 = vmatpush.msra.mxu0 %v76
    %117 = vmatpush.msra.mxu0 %v75
    %118 = vmatpush.msra.mxu0 %v74
    %119 = vmatpush.msra.mxu0 %v73
    %120 = vmatpush.msra.mxu0 %v72
    %121 = vmatpush.msra.mxu0 %v71
    %122 = vmatpush.msra.mxu0 %v70
    %123 = vmatpush.msra.mxu0 %v69
    %124 = vmatpush.msra.mxu0 %v68
    %125 = vmatpush.msra.mxu0 %v67
    %126 = vmatmul.f32.gmra.mxu0 %v48
    %v127 = vpop.f32.mrf.mxu0
    %v128 = vadd.f32 %v105, %v127
    %129 = vmatmul.f32.gmra.mxu0 %v50
    %v130 = vpop.f32.mrf.mxu0
    %v131 = vadd.f32 %v108, %v130
    %132 = vdwg.mxu0
    %133 = vst [vmem:[#allocation7] sm:$0xff] %v128
    %134 = vst [vmem:[#allocation7 + $0x8] sm:$0xff] %v131
    // Predicated region
    $region22: #{tpu_custom_call.1} parent=1 // pred_check
      _
    $region23: #{tpu_custom_call.1} parent=1 // pred_check_branch
      %136 = sbr.rel (0) target = $region25
    $region24: #{tpu_custom_call.1} parent=1 // pred_region
      %138 = vsyncadd [#allocation4], 0
      %s139 = sshll.u32 [#allocation7], 4
      %s140 = int_to_ptr.vmem [resolvable:$true] %s139
      %s141 = sshll.u32 %s3, 4
      %s142 = int_to_ptr.hbm [resolvable:$true] %s141
      %147 = dma.vmem_to_hbm [thread:$0]  %s140, 256, %s142, [#allocation4], 128, 128, 8
    $region25: #{tpu_custom_call.1} parent=1 // pred_fallthru
      _
    // Predicated region
    $region26: #{tpu_custom_call.1} parent=1 // pred_check
      _
    $region27: #{tpu_custom_call.1} parent=1 // pred_check_branch
      %149 = sbr.rel (0) target = $region29
    $region28: #{tpu_custom_call.1} parent=1 // pred_region
      %151 = dma.done [#allocation4], 256
    $region29: #{tpu_custom_call.1} parent=1 // pred_fallthru
      _
    %152 = vsyncpa [#allocation3], 1
    %153 = vsyncpa [#allocation6], 1
    %154 = vsyncpa [#allocation4], 1

</llo_original>
